<compile_context>
chip_gen: v5e
topology: v5e:2x2
jax: 0.10.0
libtpu: 0.0.40
codegen_flags: <defaults>
</compile_context>

<pallas_src>
import jax
import jax.numpy as jnp
from jax.experimental import pallas as pl
from jax.experimental.pallas import tpu as pltpu


def _round_up(x, m):
    return ((x + m - 1) // m) * m


def _pick_tile_n(n, m, d_pad, itemsize, target=1024,
                 vmem_budget=32 * 1024 * 1024):
    """Largest node tile (multiple of 8, <= target) whose double-buffered VMEM
    footprint (z tile + both output tiles + f32 accumulator) fits the budget."""
    per_row = (2 * m * d_pad * itemsize      # z tile, double-buffered
               + 4 * d_pad * itemsize        # prob + h tiles, double-buffered
               + d_pad * 4)                  # f32 accumulator headroom
    tn = min(target, max(8, vmem_budget // max(per_row, 1)))
    tn = max(8, (tn // 8) * 8)
    tn = min(tn, _round_up(n, 8))
    return tn


def hacd_sa_forward(z_mnd, w1, b1, w2, *, tile_n=1024):
    """SA_Attention + output softmax.

    z_mnd: (M, N, D) stacked per-meta-path embeddings, meta-path-major.
           (PyTorch stacks along dim=1 giving (N, M, D); emitting the stack
            meta-path-major upstream avoids a transpose and streams each view
            as a lane-dense 2-D slab.)
    w1: (D, H) Linear1 weight in x@W layout, b1: (1, H), w2: (1, H) (no bias).
    Returns (prob, h), both (N, D).
    """
    M, N, D = z_mnd.shape
    H = w1.shape[1]
    itemsize = jnp.dtype(z_mnd.dtype).itemsize

    Dp = _round_up(D, 128)
    Hp = _round_up(H, 128)
    TN = _pick_tile_n(N, M, Dp, itemsize, target=tile_n)
    Npad = _round_up(N, TN)
    nT = Npad // TN

    # Pad to lane-dense shapes (only copies when padding is actually needed).
    z_p = (z_mnd if (Npad, Dp) == (N, D)
           else jnp.pad(z_mnd, ((0, 0), (0, Npad - N), (0, Dp - D))))
    w1_p = w1 if (Dp, Hp) == (D, H) else jnp.pad(w1, ((0, Dp - D), (0, Hp - H)))
    b1_p = b1 if Hp == H else jnp.pad(b1, ((0, 0), (0, Hp - H)))
    w2_p = w2 if Hp == H else jnp.pad(w2, ((0, 0), (0, Hp - H)))

    need_node_mask = (Npad != N)
    need_lane_mask = (Dp != D)

    # ----------------------- pass 1: beta kernel ---------------------------
    def beta_kernel(z_ref, w1_ref, b1_ref, w2_ref, beta_ref, acc_ref):
        i = pl.program_id(0)
        nt = pl.num_programs(0)

        @pl.when(i == 0)
        def _init():
            acc_ref[...] = jnp.zeros_like(acc_ref)

        b1f = b1_ref[...].astype(jnp.float32)                      # (1, Hp)
        if need_node_mask:
            node = jax.lax.broadcasted_iota(jnp.int32, (TN, 1), 0) + i * TN
            valid = (node < N).astype(jnp.float32)                 # (TN, 1)

        parts = []
        for m in range(M):                                         # M is tiny
            # Lane-dense 2-D MXU matmul per view; f32 accumulation.
            h1 = jnp.tanh(
                jnp.dot(z_ref[m], w1_ref[...],
                        preferred_element_type=jnp.float32) + b1f)  # (TN, Hp)
            if need_node_mask:
                h1 = h1 * valid
            parts.append(jnp.sum(h1, axis=0, keepdims=True))        # (1, Hp)
        acc_ref[...] += jnp.concatenate(parts, axis=0)               # (M, Hp)

        @pl.when(i == nt - 1)
        def _finalize():
            # H -> 1 projection on the VPU (multiply + lane reduce), fold 1/N.
            s = jnp.sum(acc_ref[...] * w2_ref[...].astype(jnp.float32),
                        axis=-1, keepdims=True) * jnp.float32(1.0 / N)  # (M,1)
            s = s - jnp.max(s, axis=0, keepdims=True)
            e = jnp.exp(s)
            beta_ref[...] = e / jnp.sum(e, axis=0, keepdims=True)

    beta = pl.pallas_call(
        beta_kernel,
        out_shape=jax.ShapeDtypeStruct((M, 1), jnp.float32),
        grid_spec=pltpu.PrefetchScalarGridSpec(
            num_scalar_prefetch=0,
            grid=(nT,),
            in_specs=[
                pl.BlockSpec((M, TN, Dp), lambda i: (0, i, 0)),   # z tile
                pl.BlockSpec((Dp, Hp), lambda i: (0, 0)),         # w1 (pinned)
                pl.BlockSpec((1, Hp), lambda i: (0, 0)),          # b1 (pinned)
                pl.BlockSpec((1, Hp), lambda i: (0, 0)),          # w2 (pinned)
            ],
            out_specs=pl.BlockSpec((M, 1), lambda i: (0, 0)),
            scratch_shapes=[pltpu.VMEM((M, Hp), jnp.float32)],    # sum_n tanh(.)
        ),
        compiler_params=pltpu.CompilerParams(
            dimension_semantics=("arbitrary",),      # carries the accumulator
            vmem_limit_bytes=48 * 1024 * 1024,       # safe on v7x's 64 MiB too
        ),
        cost_estimate=pl.CostEstimate(
            flops=2 * Npad * M * Dp * Hp,
            transcendentals=Npad * M * Hp,
            bytes_accessed=Npad * M * Dp * itemsize + Dp * Hp * 4,
        ),
    )(z_p, w1_p, b1_p, w2_p)

    # ------------- pass 2: beta-weighted sum + output softmax --------------
    def wsum_kernel(beta_ref, z_ref, prob_ref, h_ref):
        beta_v = beta_ref[...]                                     # (M, 1) f32
        # Per-view (TN, Dp) slices accumulated into one f32 register slab.
        acc = z_ref[0].astype(jnp.float32) * beta_v[0, 0]
        for m in range(1, M):
            acc = acc + z_ref[m].astype(jnp.float32) * beta_v[m, 0]
        h_ref[...] = acc.astype(h_ref.dtype)

        if need_lane_mask:
            lane = jax.lax.broadcasted_iota(jnp.int32, (TN, Dp), 1)
            acc = jnp.where(lane < D, acc, jnp.float32(-jnp.inf))
        mx = jnp.max(acc, axis=-1, keepdims=True)
        e = jnp.exp(acc - mx)
        prob_ref[...] = (e / jnp.sum(e, axis=-1, keepdims=True)
                         ).astype(prob_ref.dtype)

    prob_p, h_p = pl.pallas_call(
        wsum_kernel,
        out_shape=(jax.ShapeDtypeStruct((Npad, Dp), z_mnd.dtype),
                   jax.ShapeDtypeStruct((Npad, Dp), z_mnd.dtype)),
        grid_spec=pltpu.PrefetchScalarGridSpec(
            num_scalar_prefetch=0,
            grid=(nT,),
            in_specs=[
                pl.BlockSpec((M, 1), lambda i: (0, 0)),           # beta (pinned)
                pl.BlockSpec((M, TN, Dp), lambda i: (0, i, 0)),   # z tile
            ],
            out_specs=[
                pl.BlockSpec((TN, Dp), lambda i: (i, 0)),         # prob
                pl.BlockSpec((TN, Dp), lambda i: (i, 0)),         # h
            ],
        ),
        compiler_params=pltpu.CompilerParams(
            # Node tiles are independent -> shards across TCs on v7x megacore.
            dimension_semantics=("parallel",),
            vmem_limit_bytes=48 * 1024 * 1024,
        ),
        cost_estimate=pl.CostEstimate(
            flops=2 * Npad * M * Dp + 4 * Npad * Dp,
            transcendentals=Npad * Dp,
            bytes_accessed=(Npad * M * Dp + 2 * Npad * Dp) * itemsize,
        ),
    )(beta, z_p)

    if (Npad, Dp) != (N, D):
        prob_p = prob_p[:N, :D]
        h_p = h_p[:N, :D]
    return prob_p, h_p


def reference(z_mnd, w1, b1, w2):
    """Pure-JAX reference mirroring the PyTorch forward (stack along dim=1)."""
    z = jnp.transpose(z_mnd, (1, 0, 2))          # (N, M, D)
    s = jnp.tanh(z @ w1 + b1) @ w2.T             # (N, M, 1)
    w = s.mean(axis=0)                           # (M, 1)
    beta = jax.nn.softmax(w, axis=0)             # (M, 1)
    h = (beta[None] * z).sum(axis=1)             # (N, D)
    prob = jax.nn.softmax(h, axis=1)             # (N, D)
    return prob, h


if __name__ == "__main__":
    key = jax.random.PRNGKey(0)
    kz1, kz2, k1, kb, k2 = jax.random.split(key, 5)
    ATOL = RTOL = 1e-4

    # --- case 1: M=4 meta-paths, N=16 nodes, D=32 (out_dim*heads), H=48 ---
    M, N, D, H = 4, 16, 32, 48
    z1 = jax.random.normal(kz1, (M, N, D), dtype=jnp.float32)
    w1 = jax.random.normal(k1, (D, H), dtype=jnp.float32) * 0.1   # Linear1.weight.T
    b1 = jax.random.normal(kb, (1, H), dtype=jnp.float32) * 0.1   # Linear1.bias
    w2 = jax.random.normal(k2, (1, H), dtype=jnp.float32) * 0.1   # Linear2.weight

    prob, h_out = jax.block_until_ready(hacd_sa_forward(z1, w1, b1, w2))
    prob_r, h_r = reference(z1, w1, b1, w2)
    assert prob.shape == (N, D) and h_out.shape == (N, D)
    assert jnp.allclose(h_out, h_r, atol=ATOL, rtol=RTOL), "h mismatch"
    assert jnp.allclose(prob, prob_r, atol=ATOL, rtol=RTOL), "prob mismatch"

    # --- case 2: awkward N (padded/masked tail tile) + multi-tile accumulation ---
    M2, N2, D2, H2 = 3, 20, 24, 32
    z2 = jax.random.normal(kz2, (M2, N2, D2), dtype=jnp.float32)
    w1b = jax.random.normal(k1, (D2, H2), dtype=jnp.float32) * 0.1
    b1b = jax.random.normal(kb, (1, H2), dtype=jnp.float32) * 0.1
    w2b = jax.random.normal(k2, (1, H2), dtype=jnp.float32) * 0.1

    prob2, h2 = jax.block_until_ready(
        hacd_sa_forward(z2, w1b, b1b, w2b, tile_n=8))
    prob2_r, h2_r = reference(z2, w1b, b1b, w2b)
    assert prob2.shape == (N2, D2) and h2.shape == (N2, D2)
    assert jnp.allclose(h2, h2_r, atol=ATOL, rtol=RTOL), "tiled h mismatch"
    assert jnp.allclose(prob2, prob2_r, atol=ATOL, rtol=RTOL), "tiled prob mismatch"

    print("KERNEL_OK")
</pallas_src>

<mosaic_0001>
module attributes {stable_mosaic.version = 11 : i64} {
  func.func @beta_kernel(%arg0: i32, %arg1: memref<4x16x128xf32, #tpu.memory_space<vmem>>, %arg2: memref<128x128xf32, #tpu.memory_space<vmem>>, %arg3: memref<1x128xf32, #tpu.memory_space<vmem>>, %arg4: memref<1x128xf32, #tpu.memory_space<vmem>>, %arg5: memref<4x1xf32, #tpu.memory_space<vmem>>, %arg6: memref<4x128xf32, #tpu.memory_space<vmem>>) attributes {dimension_semantics = [#tpu.dimension_semantics<arbitrary>], iteration_bounds = array<i64: 1>, scalar_prefetch = 0 : i64, scratch_operands = 1 : i64, tpu.core_type = #tpu.core_type<tc>, window_params = [{transform_indices = @transform_0, window_bounds = array<i64: 4, 16, 128>}, {pipeline_mode = #tpu.pipeline_mode<synchronous>, transform_indices = @transform_1, window_bounds = array<i64: 128, 128>}, {pipeline_mode = #tpu.pipeline_mode<synchronous>, transform_indices = @transform_2, window_bounds = array<i64: 1, 128>}, {pipeline_mode = #tpu.pipeline_mode<synchronous>, transform_indices = @transform_3, window_bounds = array<i64: 1, 128>}, {pipeline_mode = #tpu.pipeline_mode<synchronous>, transform_indices = @transform_4, window_bounds = array<i64: 4, 1>}]} {
    %c0_i32 = arith.constant 0 : i32
    %0 = arith.cmpi eq, %arg0, %c0_i32 : i32
    %1 = arith.extui %0 : i1 to i32
    %c0_i32_0 = arith.constant 0 : i32
    %2 = arith.cmpi ne, %1, %c0_i32_0 : i32
    scf.if %2 {
      %cst_32 = arith.constant 0.000000e+00 : f32
      %47 = vector.broadcast %cst_32 : f32 to vector<4x128xf32>
      %c0_33 = arith.constant 0 : index
      %c0_34 = arith.constant 0 : index
      %48 = vector.load %arg6[%c0_33, %c0_34] : memref<4x128xf32, #tpu.memory_space<vmem>>, vector<4x128xf32>
      tpu.vector_store %arg6[%c0_33, %c0_34], %47 {strides = array<i32>} : memref<4x128xf32, #tpu.memory_space<vmem>>, vector<4x128xf32>,
    } else {
    }
    %c0 = arith.constant 0 : index
    %c0_1 = arith.constant 0 : index
    %3 = vector.load %arg3[%c0, %c0_1] : memref<1x128xf32, #tpu.memory_space<vmem>>, vector<1x128xf32>
    %c0_2 = arith.constant 0 : index
    %c0_3 = arith.constant 0 : index
    %c0_4 = arith.constant 0 : index
    %4 = vector.load %arg1[%c0_2, %c0_3, %c0_4] : memref<4x16x128xf32, #tpu.memory_space<vmem>>, vector<1x16x128xf32>
    %5 = vector.shape_cast %4 : vector<1x16x128xf32> to vector<16x128xf32>
    %c0_5 = arith.constant 0 : index
    %c0_6 = arith.constant 0 : index
    %6 = vector.load %arg2[%c0_5, %c0_6] : memref<128x128xf32, #tpu.memory_space<vmem>>, vector<128x128xf32>
    %cst = arith.constant dense<0.000000e+00> : vector<16x128xf32>
    %7 = tpu.matmul %5, %6, %cst {dimension_numbers = #tpu.dot_dimension_numbers<[1], [0], [0], [1], [0, 0, 1, 1], [], []>} : vector<16x128xf32>, vector<128x128xf32>, vector<16x128xf32> -> vector<16x128xf32>
    %8 = vector.broadcast %3 : vector<1x128xf32> to vector<16x128xf32>
    %9 = arith.addf %7, %8 : vector<16x128xf32>
    %10 = math.tanh %9 : vector<16x128xf32>
    %cst_7 = arith.constant dense<0.000000e+00> : vector<128xf32>
    %11 = vector.multi_reduction <add>, %10, %cst_7 [0] : vector<16x128xf32> to vector<128xf32>
    %12 = vector.shape_cast %11 : vector<128xf32> to vector<1x128xf32>
    %c1 = arith.constant 1 : index
    %c0_8 = arith.constant 0 : index
    %c0_9 = arith.constant 0 : index
    %13 = vector.load %arg1[%c1, %c0_8, %c0_9] : memref<4x16x128xf32, #tpu.memory_space<vmem>>, vector<1x16x128xf32>
    %14 = vector.shape_cast %13 : vector<1x16x128xf32> to vector<16x128xf32>
    %c0_10 = arith.constant 0 : index
    %c0_11 = arith.constant 0 : index
    %15 = vector.load %arg2[%c0_10, %c0_11] : memref<128x128xf32, #tpu.memory_space<vmem>>, vector<128x128xf32>
    %cst_12 = arith.constant dense<0.000000e+00> : vector<16x128xf32>
    %16 = tpu.matmul %14, %15, %cst_12 {dimension_numbers = #tpu.dot_dimension_numbers<[1], [0], [0], [1], [0, 0, 1, 1], [], []>} : vector<16x128xf32>, vector<128x128xf32>, vector<16x128xf32> -> vector<16x128xf32>
    %17 = vector.broadcast %3 : vector<1x128xf32> to vector<16x128xf32>
    %18 = arith.addf %16, %17 : vector<16x128xf32>
    %19 = math.tanh %18 : vector<16x128xf32>
    %cst_13 = arith.constant dense<0.000000e+00> : vector<128xf32>
    %20 = vector.multi_reduction <add>, %19, %cst_13 [0] : vector<16x128xf32> to vector<128xf32>
    %21 = vector.shape_cast %20 : vector<128xf32> to vector<1x128xf32>
    %c2 = arith.constant 2 : index
    %c0_14 = arith.constant 0 : index
    %c0_15 = arith.constant 0 : index
    %22 = vector.load %arg1[%c2, %c0_14, %c0_15] : memref<4x16x128xf32, #tpu.memory_space<vmem>>, vector<1x16x128xf32>
    %23 = vector.shape_cast %22 : vector<1x16x128xf32> to vector<16x128xf32>
    %c0_16 = arith.constant 0 : index
    %c0_17 = arith.constant 0 : index
    %24 = vector.load %arg2[%c0_16, %c0_17] : memref<128x128xf32, #tpu.memory_space<vmem>>, vector<128x128xf32>
    %cst_18 = arith.constant dense<0.000000e+00> : vector<16x128xf32>
    %25 = tpu.matmul %23, %24, %cst_18 {dimension_numbers = #tpu.dot_dimension_numbers<[1], [0], [0], [1], [0, 0, 1, 1], [], []>} : vector<16x128xf32>, vector<128x128xf32>, vector<16x128xf32> -> vector<16x128xf32>
    %26 = vector.broadcast %3 : vector<1x128xf32> to vector<16x128xf32>
    %27 = arith.addf %25, %26 : vector<16x128xf32>
    %28 = math.tanh %27 : vector<16x128xf32>
    %cst_19 = arith.constant dense<0.000000e+00> : vector<128xf32>
    %29 = vector.multi_reduction <add>, %28, %cst_19 [0] : vector<16x128xf32> to vector<128xf32>
    %30 = vector.shape_cast %29 : vector<128xf32> to vector<1x128xf32>
    %c3 = arith.constant 3 : index
    %c0_20 = arith.constant 0 : index
    %c0_21 = arith.constant 0 : index
    %31 = vector.load %arg1[%c3, %c0_20, %c0_21] : memref<4x16x128xf32, #tpu.memory_space<vmem>>, vector<1x16x128xf32>
    %32 = vector.shape_cast %31 : vector<1x16x128xf32> to vector<16x128xf32>
    %c0_22 = arith.constant 0 : index
    %c0_23 = arith.constant 0 : index
    %33 = vector.load %arg2[%c0_22, %c0_23] : memref<128x128xf32, #tpu.memory_space<vmem>>, vector<128x128xf32>
    %cst_24 = arith.constant dense<0.000000e+00> : vector<16x128xf32>
    %34 = tpu.matmul %32, %33, %cst_24 {dimension_numbers = #tpu.dot_dimension_numbers<[1], [0], [0], [1], [0, 0, 1, 1], [], []>} : vector<16x128xf32>, vector<128x128xf32>, vector<16x128xf32> -> vector<16x128xf32>
    %35 = vector.broadcast %3 : vector<1x128xf32> to vector<16x128xf32>
    %36 = arith.addf %34, %35 : vector<16x128xf32>
    %37 = math.tanh %36 : vector<16x128xf32>
    %cst_25 = arith.constant dense<0.000000e+00> : vector<128xf32>
    %38 = vector.multi_reduction <add>, %37, %cst_25 [0] : vector<16x128xf32> to vector<128xf32>
    %39 = vector.shape_cast %38 : vector<128xf32> to vector<1x128xf32>
    %c0_26 = arith.constant 0 : index
    %c0_27 = arith.constant 0 : index
    %40 = vector.load %arg6[%c0_26, %c0_27] : memref<4x128xf32, #tpu.memory_space<vmem>>, vector<4x128xf32>
    %41 = tpu.concatenate %12, %21, %30, %39 in 0 : vector<1x128xf32>, vector<1x128xf32>, vector<1x128xf32>, vector<1x128xf32> -> vector<4x128xf32>
    %42 = arith.addf %40, %41 : vector<4x128xf32>
    %c0_28 = arith.constant 0 : index
    %c0_29 = arith.constant 0 : index
    %43 = vector.load %arg6[%c0_28, %c0_29] : memref<4x128xf32, #tpu.memory_space<vmem>>, vector<4x128xf32>
    tpu.vector_store %arg6[%c0_28, %c0_29], %42 {strides = array<i32>} : memref<4x128xf32, #tpu.memory_space<vmem>>, vector<4x128xf32>,
    %c0_i32_30 = arith.constant 0 : i32
    %44 = arith.cmpi eq, %arg0, %c0_i32_30 : i32
    %45 = arith.extui %44 : i1 to i32
    %c0_i32_31 = arith.constant 0 : i32
    %46 = arith.cmpi ne, %45, %c0_i32_31 : i32
    scf.if %46 {
      %c0_32 = arith.constant 0 : index
      %c0_33 = arith.constant 0 : index
      %47 = vector.load %arg6[%c0_32, %c0_33] : memref<4x128xf32, #tpu.memory_space<vmem>>, vector<4x128xf32>
      %c0_34 = arith.constant 0 : index
      %c0_35 = arith.constant 0 : index
      %48 = vector.load %arg4[%c0_34, %c0_35] : memref<1x128xf32, #tpu.memory_space<vmem>>, vector<1x128xf32>
      %49 = vector.broadcast %48 : vector<1x128xf32> to vector<4x128xf32>
      %50 = arith.mulf %47, %49 : vector<4x128xf32>
      %cst_36 = arith.constant dense<0.000000e+00> : vector<4xf32>
      %51 = vector.multi_reduction <add>, %50, %cst_36 [1] : vector<4x128xf32> to vector<4xf32>
      %52 = vector.shape_cast %51 : vector<4xf32> to vector<4x1xf32>
      %cst_37 = arith.constant 6.250000e-02 : f32
      %53 = vector.broadcast %cst_37 : f32 to vector<4x1xf32>
      %54 = arith.mulf %52, %53 : vector<4x1xf32>
      %cst_38 = arith.constant dense<0xFF800000> : vector<1xf32>
      %55 = vector.multi_reduction <maximumf>, %54, %cst_38 [0] : vector<4x1xf32> to vector<1xf32>
      %56 = vector.shape_cast %55 : vector<1xf32> to vector<1x1xf32>
      %57 = vector.broadcast %56 : vector<1x1xf32> to vector<4x1xf32>
      %58 = arith.subf %54, %57 : vector<4x1xf32>
      %59 = math.exp %58 : vector<4x1xf32>
      %cst_39 = arith.constant dense<0.000000e+00> : vector<1xf32>
      %60 = vector.multi_reduction <add>, %59, %cst_39 [0] : vector<4x1xf32> to vector<1xf32>
      %61 = vector.shape_cast %60 : vector<1xf32> to vector<1x1xf32>
      %62 = vector.broadcast %61 : vector<1x1xf32> to vector<4x1xf32>
      %63 = arith.divf %59, %62 : vector<4x1xf32>
      %c0_40 = arith.constant 0 : index
      %c0_41 = arith.constant 0 : index
      %64 = vector.load %arg5[%c0_40, %c0_41] : memref<4x1xf32, #tpu.memory_space<vmem>>, vector<4x1xf32>
      tpu.vector_store %arg5[%c0_40, %c0_41], %63 {strides = array<i32>} : memref<4x1xf32, #tpu.memory_space<vmem>>, vector<4x1xf32>,
    } else {
    }
    return
  }
  func.func @transform_0(%arg0: i32) -> (i32, i32, i32) {
    %c0_i32 = arith.constant 0 : i32
    %c0_i32_0 = arith.constant 0 : i32
    %c0_i32_1 = arith.constant 0 : i32
    return %c0_i32, %arg0, %c0_i32_0 : i32, i32, i32
  }
  func.func @transform_1(%arg0: i32) -> (i32, i32) {
    %c0_i32 = arith.constant 0 : i32
    %c0_i32_0 = arith.constant 0 : i32
    %c0_i32_1 = arith.constant 0 : i32
    return %c0_i32, %c0_i32_0 : i32, i32
  }
  func.func @transform_2(%arg0: i32) -> (i32, i32) {
    %c0_i32 = arith.constant 0 : i32
    %c0_i32_0 = arith.constant 0 : i32
    %c0_i32_1 = arith.constant 0 : i32
    return %c0_i32, %c0_i32_0 : i32, i32
  }
  func.func @transform_3(%arg0: i32) -> (i32, i32) {
    %c0_i32 = arith.constant 0 : i32
    %c0_i32_0 = arith.constant 0 : i32
    %c0_i32_1 = arith.constant 0 : i32
    return %c0_i32, %c0_i32_0 : i32, i32
  }
  func.func @transform_4(%arg0: i32) -> (i32, i32) {
    %c0_i32 = arith.constant 0 : i32
    %c0_i32_0 = arith.constant 0 : i32
    %c0_i32_1 = arith.constant 0 : i32
    return %c0_i32, %c0_i32_0 : i32, i32
  }
}

</mosaic_0001>

<llo_original>
// kernel: tpu_custom_call.1
$region0: #{tpu_custom_call.1}
  #allocation0 [shape = 'u32[]', space=smem, size = 0x4, offset = 0x4, fixed_abs, tag = 'smem constant byte address 0x4 - core index']
  #allocation1 [shape = 'u32[72,128]{1,0:T(1,128)}', space=vmem, size = 0x9000, scoped, tag = 'internal scratch']
  #allocation2 [shape = 'f32[4,128]{1,0:T(4,128)}', space=vmem, size = 0x800, scoped, tag = 'scratch operand']
  %s0 = inlined_call_operand.hbm [shape: f32[4,16,128], index: 0, kind: input, shape index: {}]
  %s1 = inlined_call_operand.hbm [shape: f32[128,128], index: 1, kind: input, shape index: {}]
  %s2 = inlined_call_operand.vmem [shape: f32[1,128], index: 2, kind: input, shape index: {}]
  %s3 = inlined_call_operand.vmem [shape: f32[1,128], index: 3, kind: input, shape index: {}]
  %s4 = inlined_call_operand.vmem [shape: f32[4,1], index: 4, kind: output, shape index: {}]
  %s5 = sld [smem:[#allocation0]]
  $region42: #{tpu_custom_call.1} parent=0
    _
  %s7 = ssub.s32 1, %s5
  %s8 = scalar_select 0, %s7, %s5
  $region1: #{tpu_custom_call.1} parent=0
    #allocation3 [shape = 'u8[32768]{0}', space=vmem, size = 0x8000, scoped, tag = 'input window, operand 0, single buffered']
    #allocation4 [shape = 's32[1]{0}', space=sflag, size = 0x4, scoped, tag = 'scoped memory for tpu_custom_call.1']
    #allocation5 [shape = 'u8[65536]{0}', space=vmem, size = 0x10000, scoped, tag = 'input window, operand 1, single buffered']
    #allocation6 [shape = 's32[1]{0}', space=sflag, size = 0x4, scoped, tag = 'scoped memory for tpu_custom_call.1']
    %9 = vsyncpa [#allocation4], 0
    %10 = vsyncpa [#allocation6], 0
    // Predicated region
    $region2: #{tpu_custom_call.1} parent=1 // pred_check
      _
    $region3: #{tpu_custom_call.1} parent=1 // pred_check_branch
      %12 = sbr.rel (0) target = $region5
    $region4: #{tpu_custom_call.1} parent=1 // pred_region
      %14 = vsyncadd [#allocation4], 0
      %s15 = sshll.u32 %s0, 4
      %s16 = int_to_ptr.hbm [resolvable:$true] %s15
      %s17 = sshll.u32 [#allocation3], 4
      %s18 = int_to_ptr.vmem [resolvable:$true] %s17
      %23 = dma.hbm_to_vmem [thread:$0]  %s16, 1024, %s18, [#allocation4], 128, 128, 8
    $region5: #{tpu_custom_call.1} parent=1 // pred_fallthru
      _
    // Predicated region
    $region6: #{tpu_custom_call.1} parent=1 // pred_check
      _
    $region7: #{tpu_custom_call.1} parent=1 // pred_check_branch
      %25 = sbr.rel (0) target = $region9
    $region8: #{tpu_custom_call.1} parent=1 // pred_region
      %27 = vsyncadd [#allocation6], 0
      %s28 = sshll.u32 %s1, 4
      %s29 = int_to_ptr.hbm [resolvable:$true] %s28
      %s30 = sshll.u32 [#allocation5], 4
      %s31 = int_to_ptr.vmem [resolvable:$true] %s30
      %36 = dma.hbm_to_vmem [thread:$0]  %s29, 2048, %s31, [#allocation6], 128, 128, 8
    $region9: #{tpu_custom_call.1} parent=1 // pred_fallthru
      _
    // Predicated region
    $region10: #{tpu_custom_call.1} parent=1 // pred_check
      _
    $region11: #{tpu_custom_call.1} parent=1 // pred_check_branch
      %38 = sbr.rel (0) target = $region13
    $region12: #{tpu_custom_call.1} parent=1 // pred_region
      _
    $region13: #{tpu_custom_call.1} parent=1 // pred_fallthru
      _
    // Predicated region
    $region14: #{tpu_custom_call.1} parent=1 // pred_check
      _
    $region15: #{tpu_custom_call.1} parent=1 // pred_check_branch
      %40 = sbr.rel (0) target = $region17
    $region16: #{tpu_custom_call.1} parent=1 // pred_region
      _
    $region17: #{tpu_custom_call.1} parent=1 // pred_fallthru
      _
    // Predicated region
    $region18: #{tpu_custom_call.1} parent=1 // pred_check
      _
    $region19: #{tpu_custom_call.1} parent=1 // pred_check_branch
      %42 = sbr.rel (0) target = $region21
    $region20: #{tpu_custom_call.1} parent=1 // pred_region
      %44 = dma.done [#allocation4], 1024
    $region21: #{tpu_custom_call.1} parent=1 // pred_fallthru
      _
    // Predicated region
    $region22: #{tpu_custom_call.1} parent=1 // pred_check
      _
    $region23: #{tpu_custom_call.1} parent=1 // pred_check_branch
      %46 = sbr.rel (0) target = $region25
    $region24: #{tpu_custom_call.1} parent=1 // pred_region
      %48 = dma.done [#allocation6], 2048
    $region25: #{tpu_custom_call.1} parent=1 // pred_fallthru
      _
    %p49 = scmp.eq.s32.totalorder 0, 0
    // Predicated region
    $region26: #{tpu_custom_call.1} parent=1 // pred_check
      %p50 = pneg %p49
    $region27: #{tpu_custom_call.1} parent=1 // pred_check_branch
      %52 = sbr.rel (%p50) target = $region29
    $region28: #{tpu_custom_call.1} parent=1 // pred_region
      %53 = vst [vmem:[#allocation2] sm:$0xf] 0.0
    $region29: #{tpu_custom_call.1} parent=1 // pred_fallthru
      _
    %v54 = vld [vmem:[%s2] sm:$0x1]
    %v55 = vld [vmem:[#allocation3] sm:$0xff]
    %v56 = vld [vmem:[#allocation3 + $0x8] sm:$0xff]
    %v57 = vld [vmem:[#allocation5] sm:$0xff]
    %v58 = vld [vmem:[#allocation5 + $0x8] sm:$0xff]
    %v59 = vld [vmem:[#allocation5 + $0x10] sm:$0xff]
    %v60 = vld [vmem:[#allocation5 + $0x18] sm:$0xff]
    %v61 = vld [vmem:[#allocation5 + $0x20] sm:$0xff]
    %v62 = vld [vmem:[#allocation5 + $0x28] sm:$0xff]
    %v63 = vld [vmem:[#allocation5 + $0x30] sm:$0xff]
    %v64 = vld [vmem:[#allocation5 + $0x38] sm:$0xff]
    %v65 = vld [vmem:[#allocation5 + $0x40] sm:$0xff]
    %v66 = vld [vmem:[#allocation5 + $0x48] sm:$0xff]
    %v67 = vld [vmem:[#allocation5 + $0x50] sm:$0xff]
    %v68 = vld [vmem:[#allocation5 + $0x58] sm:$0xff]
    %v69 = vld [vmem:[#allocation5 + $0x60] sm:$0xff]
    %v70 = vld [vmem:[#allocation5 + $0x68] sm:$0xff]
    %v71 = vld [vmem:[#allocation5 + $0x70] sm:$0xff]
    %v72 = vld [vmem:[#allocation5 + $0x78] sm:$0xff]
    %v74 = vperm.slane %v54, 0
    %76 = vmatpush.msra.mxu0 %v72
    %77 = vmatpush.msra.mxu0 %v71
    %78 = vmatpush.msra.mxu0 %v70
    %79 = vmatpush.msra.mxu0 %v69
    %80 = vmatpush.msra.mxu0 %v68
    %81 = vmatpush.msra.mxu0 %v67
    %82 = vmatpush.msra.mxu0 %v66
    %83 = vmatpush.msra.mxu0 %v65
    %84 = vmatpush.msra.mxu0 %v64
    %85 = vmatpush.msra.mxu0 %v63
    %86 = vmatpush.msra.mxu0 %v62
    %87 = vmatpush.msra.mxu0 %v61
    %88 = vmatpush.msra.mxu0 %v60
    %89 = vmatpush.msra.mxu0 %v59
    %90 = vmatpush.msra.mxu0 %v58
    %91 = vmatpush.msra.mxu0 %v57
    %92 = vmatmul.f32.gmra.mxu0 %v55
    %v93 = vpop.f32.mrf.mxu0
    %v94 = vadd.f32 %v74, %v93
    %95 = vmatmul.f32.gmra.mxu0 %v56
    %v96 = vpop.f32.mrf.mxu0
    %v97 = vadd.f32 %v74, %v96
    %98 = vdwg.mxu0
    %v99 = vtanh.pop %v94
    %v100 = vtanh.pop %v97
    %v101 = vadd.f32 %v99, %v100
    %v102 = vrot.slane %v101, 4
    %v103 = vadd.f32 %v101, %v102
    %v104 = vrot.slane %v103, 2
    %v105 = vadd.f32 %v103, %v104
    %v106 = vrot.slane %v105, 1
    %v107 = vadd.f32 %v105, %v106
    %s108 = scalar_lea.vmem [#allocation3], 16
    %v109 = vld [vmem:[%s108] sm:$0xff]
    %v110 = vld [vmem:[%s108 + $0x8] sm:$0xff]
    %111 = vmatpush.msra.mxu0 %v72
    %112 = vmatpush.msra.mxu0 %v71
    %113 = vmatpush.msra.mxu0 %v70
    %114 = vmatpush.msra.mxu0 %v69
    %115 = vmatpush.msra.mxu0 %v68
    %116 = vmatpush.msra.mxu0 %v67
    %117 = vmatpush.msra.mxu0 %v66
    %118 = vmatpush.msra.mxu0 %v65
    %119 = vmatpush.msra.mxu0 %v64
    %120 = vmatpush.msra.mxu0 %v63
    %121 = vmatpush.msra.mxu0 %v62
    %122 = vmatpush.msra.mxu0 %v61
    %123 = vmatpush.msra.mxu0 %v60
    %124 = vmatpush.msra.mxu0 %v59
    %125 = vmatpush.msra.mxu0 %v58
    %126 = vmatpush.msra.mxu0 %v57
    %127 = vmatmul.f32.gmra.mxu0 %v109
    %v128 = vpop.f32.mrf.mxu0
    %v129 = vadd.f32 %v74, %v128
    %130 = vmatmul.f32.gmra.mxu0 %v110
    %v131 = vpop.f32.mrf.mxu0
    %v132 = vadd.f32 %v74, %v131
    %133 = vdwg.mxu0
    %v134 = vtanh.pop %v129
    %v135 = vtanh.pop %v132
    %v136 = vadd.f32 %v134, %v135
    %v137 = vrot.slane %v136, 4
    %v138 = vadd.f32 %v136, %v137
    %v139 = vrot.slane %v138, 2
    %v140 = vadd.f32 %v138, %v139
    %v141 = vrot.slane %v140, 1
    %v142 = vadd.f32 %v140, %v141
    %s143 = scalar_lea.vmem [#allocation3], 32
    %v144 = vld [vmem:[%s143] sm:$0xff]
    %v145 = vld [vmem:[%s143 + $0x8] sm:$0xff]
    %146 = vmatpush.msra.mxu0 %v72
    %147 = vmatpush.msra.mxu0 %v71
    %148 = vmatpush.msra.mxu0 %v70
    %149 = vmatpush.msra.mxu0 %v69
    %150 = vmatpush.msra.mxu0 %v68
    %151 = vmatpush.msra.mxu0 %v67
    %152 = vmatpush.msra.mxu0 %v66
    %153 = vmatpush.msra.mxu0 %v65
    %154 = vmatpush.msra.mxu0 %v64
    %155 = vmatpush.msra.mxu0 %v63
    %156 = vmatpush.msra.mxu0 %v62
    %157 = vmatpush.msra.mxu0 %v61
    %158 = vmatpush.msra.mxu0 %v60
    %159 = vmatpush.msra.mxu0 %v59
    %160 = vmatpush.msra.mxu0 %v58
    %161 = vmatpush.msra.mxu0 %v57
    %162 = vmatmul.f32.gmra.mxu0 %v144
    %v163 = vpop.f32.mrf.mxu0
    %v164 = vadd.f32 %v74, %v163
    %165 = vmatmul.f32.gmra.mxu0 %v145
    %v166 = vpop.f32.mrf.mxu0
    %v167 = vadd.f32 %v74, %v166
    %168 = vdwg.mxu0
    %v169 = vtanh.pop %v164
    %v170 = vtanh.pop %v167
    %v171 = vadd.f32 %v169, %v170
    %v172 = vrot.slane %v171, 4
    %v173 = vadd.f32 %v171, %v172
    %v174 = vrot.slane %v173, 2
    %v175 = vadd.f32 %v173, %v174
    %v176 = vrot.slane %v175, 1
    %v177 = vadd.f32 %v175, %v176
    %s178 = scalar_lea.vmem [#allocation3], 48
    %v179 = vld [vmem:[%s178] sm:$0xff]
    %v180 = vld [vmem:[%s178 + $0x8] sm:$0xff]
    %181 = vmatpush.msra.mxu0 %v72
    %182 = vmatpush.msra.mxu0 %v71
    %183 = vmatpush.msra.mxu0 %v70
    %184 = vmatpush.msra.mxu0 %v69
    %185 = vmatpush.msra.mxu0 %v68
    %186 = vmatpush.msra.mxu0 %v67
    %187 = vmatpush.msra.mxu0 %v66
    %188 = vmatpush.msra.mxu0 %v65
    %189 = vmatpush.msra.mxu0 %v64
    %190 = vmatpush.msra.mxu0 %v63
    %191 = vmatpush.msra.mxu0 %v62
    %192 = vmatpush.msra.mxu0 %v61
    %193 = vmatpush.msra.mxu0 %v60
    %194 = vmatpush.msra.mxu0 %v59
    %195 = vmatpush.msra.mxu0 %v58
    %196 = vmatpush.msra.mxu0 %v57
    %197 = vmatmul.f32.gmra.mxu0 %v179
    %v198 = vpop.f32.mrf.mxu0
    %v199 = vadd.f32 %v74, %v198
    %200 = vmatmul.f32.gmra.mxu0 %v180
    %v201 = vpop.f32.mrf.mxu0
    %v202 = vadd.f32 %v74, %v201
    %203 = vdwg.mxu0
    %v204 = vtanh.pop %v199
    %v205 = vtanh.pop %v202
    %v206 = vadd.f32 %v204, %v205
    %v207 = vrot.slane %v206, 4
    %v208 = vadd.f32 %v206, %v207
    %v209 = vrot.slane %v208, 2
    %v210 = vadd.f32 %v208, %v209
    %v211 = vrot.slane %v210, 1
    %v212 = vadd.f32 %v210, %v211
    %v213 = vld [vmem:[#allocation2] sm:$0xf]
    %vm214 = vcmask 1040384
    %v215 = vsel %vm214, %v107, %v142
    %vm216 = vcmask 1041408
    %v217 = vsel %vm216, %v215, %v177
    %vm218 = vcmask 1042432
    %v219 = vsel %vm218, %v217, %v212
    %v220 = vadd.f32 %v213, %v219
    %221 = vst [vmem:[#allocation2] sm:$0xf] %v220
    // Predicated region
    $region30: #{tpu_custom_call.1} parent=1 // pred_check
      %p222 = pneg %p49
    $region31: #{tpu_custom_call.1} parent=1 // pred_check_branch
      %224 = sbr.rel (%p222) target = $region33
    $region32: #{tpu_custom_call.1} parent=1 // pred_region
      %v225 = vld [vmem:[#allocation2] sm:$0xf]
      %v226 = vld [vmem:[%s3] sm:$0x1]
      %v228 = vperm.slane %v226, 0
      %v230 = vmul.f32 %v225, %v228
      %vm231 = vcmask 1043456
      %v232 = vsel %vm231, %v230, 0.0
      %233 = vadd.xlane.f32.xlu0 %v232
      %v234 = vpop.xlane.xlu0 %233
      %v235 = vmul.f32 %v234, 0.0625
      %v236 = vsel %vm231, %v235, -inf
      %v237 = vrot.slane %v236, 4
      %v238 = vmax.f32 %v236, %v237
      %v239 = vrot.slane %v238, 2
      %v240 = vmax.f32 %v238, %v239
      %v241 = vrot.slane %v240, 1
      %v242 = vmax.f32 %v240, %v241
      %v243 = vsub.f32 %v235, %v242
      %v244 = vmul.f32 %v243, 1.442695
      %v245 = vpow.pop %v244
      %v246 = vsel %vm231, %v245, 0.0
      %v247 = vrot.slane %v246, 4
      %v248 = vadd.f32 %v246, %v247
      %v249 = vrot.slane %v248, 2
      %v250 = vadd.f32 %v248, %v249
      %v251 = vrot.slane %v250, 1
      %v252 = vadd.f32 %v250, %v251
      %v253 = vrcp.pop %v252
      %v254 = vmul.f32 %v252, %v253
      %v255 = vsub.f32 1.0, %v254
      %v256 = vmul.f32 %v253, %v255
      %v257 = vadd.f32 %v253, %v256
      %vm258 = vweird.f32 %v252
      %vm259 = vweird.f32 %v253
      %vm260 = vmor %vm258, %vm259
      %v261 = vsel %vm260, %v253, %v257
      %v262 = vand.u32 2147483647, %v252
      %vm263 = vcmp.eq.f32.partialorder %v262, 8.507059e+37
      %v264 = vand.u32 %v252, 2147483648
      %v265 = vor.u32 1.1754944e-38, %v264
      %v266 = vsel %vm263, %v265, %v261
      %v267 = vmul.f32 %v245, %v266
      %vm268 = vcmask 3072
      %269 = vst.msk [vmem:[%s4] sm:$0xf] %vm268, %v267
    $region33: #{tpu_custom_call.1} parent=1 // pred_fallthru
      _
    // Predicated region
    $region34: #{tpu_custom_call.1} parent=1 // pred_check
      _
    $region35: #{tpu_custom_call.1} parent=1 // pred_check_branch
      %271 = sbr.rel (0) target = $region37
    $region36: #{tpu_custom_call.1} parent=1 // pred_region
      _
    $region37: #{tpu_custom_call.1} parent=1 // pred_fallthru
      _
    // Predicated region
    $region38: #{tpu_custom_call.1} parent=1 // pred_check
      _
    $region39: #{tpu_custom_call.1} parent=1 // pred_check_branch
      %273 = sbr.rel (0) target = $region41
    $region40: #{tpu_custom_call.1} parent=1 // pred_region
      _
    $region41: #{tpu_custom_call.1} parent=1 // pred_fallthru
      _
    %274 = vsyncpa [#allocation4], 1
    %275 = vsyncpa [#allocation6], 1

</llo_original>
